<compile_context>
chip_gen: v5e
topology: v5e:2x2
jax: 0.10.0
libtpu: 0.0.40
codegen_flags: <defaults>
</compile_context>

<pallas_src>
import functools

import jax
import jax.numpy as jnp
from jax import lax
from jax.experimental import pallas as pl
from jax.experimental.pallas import tpu as pltpu


def decode_kernel(x_ref, mask_ref, w1_ref, b1_ref, w2_ref, b2_ref,
                  w3_ref, b3_ref, out_ref, pmat_ref, *, width, cin_slot):
    # x_ref    : (1, Cin, H*W)        one batch element, spatial flattened on lanes
    # mask_ref : (9, H*W)             0/1 tap-validity mask (implements zero pad)
    # w1_ref   : (Cout, 9*cin_slot)   im2col 3x3 weights, BN scale folded in
    # w2_ref, w3_ref : (Cout, Cout)   1x1 conv weights (out, in), BN scale folded in
    # b*_ref   : (Cout, 1)            folded BN + conv bias
    # out_ref  : (1, Cout, H*W)
    # pmat_ref : VMEM (9*cin_slot, H*W) im2col patch matrix scratch
    x = x_ref[0]                       # (Cin, HW), lane-dense
    cin = x.shape[0]
    hw = x.shape[1]
    mask = mask_ref[...]               # (9, HW)

    # --- build the im2col patch matrix (one 8-aligned row slot per 3x3 tap) ---
    pmat_ref[...] = jnp.zeros_like(pmat_ref)   # unused slot rows must be 0
    for dy in range(3):
        for dx in range(3):
            k = dy * 3 + dx
            s = (dy - 1) * width + (dx - 1)    # flat spatial shift of this tap
            shifted = x if s == 0 else pltpu.roll(x, shift=(-s) % hw, axis=1)
            patch = shifted * mask[k:k + 1, :]  # zero out-of-image taps
            pmat_ref[k * cin_slot:k * cin_slot + cin, :] = patch

    # --- conv1 (3x3) as ONE MXU matmul, then folded-BN bias + ReLU ---
    y = jnp.dot(w1_ref[...], pmat_ref[...], preferred_element_type=jnp.float32)
    y = jnp.maximum(y + b1_ref[...], 0.0)

    # --- conv2 (1x1) + bias + ReLU ---
    y = jnp.dot(w2_ref[...], y, preferred_element_type=jnp.float32)
    y = jnp.maximum(y + b2_ref[...], 0.0)

    # --- conv3 (1x1) + bias + ReLU ---
    y = jnp.dot(w3_ref[...], y, preferred_element_type=jnp.float32)
    y = jnp.maximum(y + b3_ref[...], 0.0)

    out_ref[0] = y.astype(out_ref.dtype)       # (Cout, HW): full 128-lane stores


def _tap_masks(H, W):
    """(9, H*W) float32 0/1 masks: mask[dy*3+dx, h*W+w] == 1 iff the 3x3 tap
    (dy, dx) reads an in-image pixel (equivalent to zero padding=1)."""
    h_idx = jnp.repeat(jnp.arange(H, dtype=jnp.int32), W)   # (HW,)
    w_idx = jnp.tile(jnp.arange(W, dtype=jnp.int32), H)     # (HW,)
    masks = []
    for dy in range(3):
        for dx in range(3):
            sy, sx = dy - 1, dx - 1
            valid = ((h_idx + sy >= 0) & (h_idx + sy < H) &
                     (w_idx + sx >= 0) & (w_idx + sx < W))
            masks.append(valid.astype(jnp.float32))
    return jnp.stack(masks, axis=0)                          # (9, HW)


def _fold_params(raw, cin_slot, eps=1e-5):
    """Fold eval-mode BatchNorm (+ conv bias) into matmul-form weights/biases."""
    (w1, cb1, g1, be1, m1, v1,
     w2, cb2, g2, be2, m2, v2,
     w3, cb3, g3, be3, m3, v3) = raw
    cout, cin = w1.shape[0], w1.shape[1]

    def fold(gamma, beta, mean, var, conv_bias):
        scale = gamma / jnp.sqrt(var + eps)
        bias = beta + (conv_bias - mean) * scale
        return scale, bias.reshape(-1, 1)

    s1, b1 = fold(g1, be1, m1, v1, cb1)
    s2, b2 = fold(g2, be2, m2, v2, cb2)
    s3, b3 = fold(g3, be3, m3, v3, cb3)

    # conv1: (Cout, Cin, 3, 3) * scale -> (Cout, 3, 3, Cin) -> pad Cin to the
    # 8-aligned slot size -> (Cout, 9*cin_slot), column (dy*3+dx)*cin_slot + ci.
    w1s = jnp.transpose(w1 * s1[:, None, None, None], (0, 2, 3, 1))
    w1s = jnp.pad(w1s, ((0, 0), (0, 0), (0, 0), (0, cin_slot - cin)))
    w1m = w1s.reshape(cout, 9 * cin_slot)

    w2m = w2 * s2[:, None]          # (Cout, Cout), [out, in]
    w3m = w3 * s3[:, None]
    return w1m, b1, w2m, b2, w3m, b3


def decode_pallas(x_nchw, raw_params):
    """x_nchw: (N, Cin, H, W) float32 -> (N, Cout, H, W) float32."""
    N, Cin, H, W = x_nchw.shape
    HW = H * W
    cin_slot = ((Cin + 7) // 8) * 8

    w1m, b1, w2m, b2, w3m, b3 = _fold_params(raw_params, cin_slot)
    Cout = w1m.shape[0]

    x2 = x_nchw.reshape(N, Cin, HW)       # free reshape (contiguous dims merge)
    mask = _tap_masks(H, W)               # (9, HW)

    kernel = functools.partial(decode_kernel, width=W, cin_slot=cin_slot)

    out2 = pl.pallas_call(
        kernel,
        out_shape=jax.ShapeDtypeStruct((N, Cout, HW), jnp.float32),
        grid_spec=pltpu.PrefetchScalarGridSpec(
            num_scalar_prefetch=0,
            grid=(N,),
            in_specs=[
                pl.BlockSpec((1, Cin, HW), lambda n: (n, 0, 0)),
                pl.BlockSpec((9, HW), lambda n: (0, 0)),
                pl.BlockSpec((Cout, 9 * cin_slot), lambda n: (0, 0)),
                pl.BlockSpec((Cout, 1), lambda n: (0, 0)),
                pl.BlockSpec((Cout, Cout), lambda n: (0, 0)),
                pl.BlockSpec((Cout, 1), lambda n: (0, 0)),
                pl.BlockSpec((Cout, Cout), lambda n: (0, 0)),
                pl.BlockSpec((Cout, 1), lambda n: (0, 0)),
            ],
            out_specs=pl.BlockSpec((1, Cout, HW), lambda n: (n, 0, 0)),
            scratch_shapes=[pltpu.VMEM((9 * cin_slot, HW), jnp.float32)],
        ),
        compiler_params=pltpu.CompilerParams(
            dimension_semantics=("parallel",)),
    )(x2, mask, w1m, b1, w2m, b2, w3m, b3)

    return out2.reshape(N, Cout, H, W)    # free reshape (contiguous dim split)


def make_params(key, ch_in, ch_out):
    """Deterministic synthetic parameters in PyTorch layout: conv weights
    (OIHW; 1x1 convs stored as (out, in)), conv biases, and BatchNorm
    (gamma, beta, running_mean, running_var) per stage."""
    ks = jax.random.split(key, 18)
    f = jnp.float32

    w1 = 0.1 * jax.random.normal(ks[0], (ch_out, ch_in, 3, 3), f)
    cb1 = 0.1 * jax.random.normal(ks[1], (ch_out,), f)
    g1 = 1.0 + 0.1 * jax.random.normal(ks[2], (ch_out,), f)
    be1 = 0.1 * jax.random.normal(ks[3], (ch_out,), f)
    m1 = 0.1 * jax.random.normal(ks[4], (ch_out,), f)
    v1 = jnp.abs(jax.random.normal(ks[5], (ch_out,), f)) + 0.5

    w2 = 0.1 * jax.random.normal(ks[6], (ch_out, ch_out), f)
    cb2 = 0.1 * jax.random.normal(ks[7], (ch_out,), f)
    g2 = 1.0 + 0.1 * jax.random.normal(ks[8], (ch_out,), f)
    be2 = 0.1 * jax.random.normal(ks[9], (ch_out,), f)
    m2 = 0.1 * jax.random.normal(ks[10], (ch_out,), f)
    v2 = jnp.abs(jax.random.normal(ks[11], (ch_out,), f)) + 0.5

    w3 = 0.1 * jax.random.normal(ks[12], (ch_out, ch_out), f)
    cb3 = 0.1 * jax.random.normal(ks[13], (ch_out,), f)
    g3 = 1.0 + 0.1 * jax.random.normal(ks[14], (ch_out,), f)
    be3 = 0.1 * jax.random.normal(ks[15], (ch_out,), f)
    m3 = 0.1 * jax.random.normal(ks[16], (ch_out,), f)
    v3 = jnp.abs(jax.random.normal(ks[17], (ch_out,), f)) + 0.5

    return (w1, cb1, g1, be1, m1, v1,
            w2, cb2, g2, be2, m2, v2,
            w3, cb3, g3, be3, m3, v3)


def decode_ref(x_nchw, raw_params, eps=1e-5):
    """Pure-JAX (lax.conv) reference matching the PyTorch forward in eval mode."""
    (w1, cb1, g1, be1, m1, v1,
     w2, cb2, g2, be2, m2, v2,
     w3, cb3, g3, be3, m3, v3) = raw_params
    dn = ('NCHW', 'OIHW', 'NCHW')

    def bn_relu(y, g, be, m, v):
        y = (y - m.reshape(1, -1, 1, 1)) * (g / jnp.sqrt(v + eps)).reshape(1, -1, 1, 1) \
            + be.reshape(1, -1, 1, 1)
        return jnp.maximum(y, 0.0)

    y = lax.conv_general_dilated(x_nchw, w1, (1, 1), ((1, 1), (1, 1)),
                                 dimension_numbers=dn) + cb1.reshape(1, -1, 1, 1)
    y = bn_relu(y, g1, be1, m1, v1)

    y = lax.conv_general_dilated(y, w2[:, :, None, None], (1, 1), ((0, 0), (0, 0)),
                                 dimension_numbers=dn) + cb2.reshape(1, -1, 1, 1)
    y = bn_relu(y, g2, be2, m2, v2)

    y = lax.conv_general_dilated(y, w3[:, :, None, None], (1, 1), ((0, 0), (0, 0)),
                                 dimension_numbers=dn) + cb3.reshape(1, -1, 1, 1)
    y = bn_relu(y, g3, be3, m3, v3)
    return y


if __name__ == "__main__":
    key = jax.random.PRNGKey(0)
    kx, kp = jax.random.split(key)

    N, ch_in, ch_out, H, W = 2, 4, 8, 16, 16
    x = jax.random.normal(kx, (N, ch_in, H, W), jnp.float32)
    params = make_params(kp, ch_in, ch_out)

    decode_fn = jax.jit(decode_pallas)
    out = jax.block_until_ready(decode_fn(x, params))

    ref = jax.block_until_ready(decode_ref(x, params))
    assert out.shape == (N, ch_out, H, W)
    err = jnp.max(jnp.abs(out - ref))
    assert jnp.allclose(out, ref, atol=1e-4, rtol=1e-4), f"max abs err {err}"

    print("KERNEL_OK")
</pallas_src>

<mosaic_0001>
module attributes {stable_mosaic.version = 11 : i64} {
  func.func @decode_kernel(%arg0: i32, %arg1: memref<1x4x256xf32, #tpu.memory_space<vmem>>, %arg2: memref<9x256xf32, #tpu.memory_space<vmem>>, %arg3: memref<8x72xf32, #tpu.memory_space<vmem>>, %arg4: memref<8x1xf32, #tpu.memory_space<vmem>>, %arg5: memref<8x8xf32, #tpu.memory_space<vmem>>, %arg6: memref<8x1xf32, #tpu.memory_space<vmem>>, %arg7: memref<8x8xf32, #tpu.memory_space<vmem>>, %arg8: memref<8x1xf32, #tpu.memory_space<vmem>>, %arg9: memref<1x8x256xf32, #tpu.memory_space<vmem>>, %arg10: memref<72x256xf32, #tpu.memory_space<vmem>>) attributes {dimension_semantics = [#tpu.dimension_semantics<parallel>], iteration_bounds = array<i64: 2>, scalar_prefetch = 0 : i64, scratch_operands = 1 : i64, tpu.core_type = #tpu.core_type<tc>, window_params = [{transform_indices = @transform_0, window_bounds = array<i64: 1, 4, 256>}, {pipeline_mode = #tpu.pipeline_mode<synchronous>, transform_indices = @transform_1, window_bounds = array<i64: 9, 256>}, {pipeline_mode = #tpu.pipeline_mode<synchronous>, transform_indices = @transform_2, window_bounds = array<i64: 8, 72>}, {pipeline_mode = #tpu.pipeline_mode<synchronous>, transform_indices = @transform_3, window_bounds = array<i64: 8, 1>}, {pipeline_mode = #tpu.pipeline_mode<synchronous>, transform_indices = @transform_4, window_bounds = array<i64: 8, 8>}, {pipeline_mode = #tpu.pipeline_mode<synchronous>, transform_indices = @transform_5, window_bounds = array<i64: 8, 1>}, {pipeline_mode = #tpu.pipeline_mode<synchronous>, transform_indices = @transform_6, window_bounds = array<i64: 8, 8>}, {pipeline_mode = #tpu.pipeline_mode<synchronous>, transform_indices = @transform_7, window_bounds = array<i64: 8, 1>}, {transform_indices = @transform_8, window_bounds = array<i64: 1, 8, 256>}]} {
    %c0 = arith.constant 0 : index
    %c0_0 = arith.constant 0 : index
    %c0_1 = arith.constant 0 : index
    %0 = vector.load %arg1[%c0, %c0_0, %c0_1] : memref<1x4x256xf32, #tpu.memory_space<vmem>>, vector<1x4x256xf32>
    %1 = vector.shape_cast %0 : vector<1x4x256xf32> to vector<4x256xf32>
    %c0_2 = arith.constant 0 : index
    %c0_3 = arith.constant 0 : index
    %2 = vector.load %arg2[%c0_2, %c0_3] : memref<9x256xf32, #tpu.memory_space<vmem>>, vector<9x256xf32>
    %cst = arith.constant 0.000000e+00 : f32
    %3 = vector.broadcast %cst : f32 to vector<72x256xf32>
    %c0_4 = arith.constant 0 : index
    %c0_5 = arith.constant 0 : index
    %4 = vector.load %arg10[%c0_4, %c0_5] : memref<72x256xf32, #tpu.memory_space<vmem>>, vector<72x256xf32>
    tpu.vector_store %arg10[%c0_4, %c0_5], %3 {strides = array<i32>} : memref<72x256xf32, #tpu.memory_space<vmem>>, vector<72x256xf32>,
    %c17_i32 = arith.constant 17 : i32
    %5 = tpu.dynamic_rotate %1 by %c17_i32 dim 1 : vector<4x256xf32>, i32 -> vector<4x256xf32>
    %6 = vector.extract_strided_slice %2 {offsets = [0, 0], sizes = [1, 256], strides = [1, 1]} : vector<9x256xf32> to vector<1x256xf32>
    %7 = vector.broadcast %6 : vector<1x256xf32> to vector<4x256xf32>
    %8 = arith.mulf %5, %7 : vector<4x256xf32>
    %c0_6 = arith.constant 0 : index
    %c0_7 = arith.constant 0 : index
    %9 = vector.load %arg10[%c0_6, %c0_7] : memref<72x256xf32, #tpu.memory_space<vmem>>, vector<4x256xf32>
    tpu.vector_store %arg10[%c0_6, %c0_7], %8 {strides = array<i32>} : memref<72x256xf32, #tpu.memory_space<vmem>>, vector<4x256xf32>,
    %c16_i32 = arith.constant 16 : i32
    %10 = tpu.dynamic_rotate %1 by %c16_i32 dim 1 : vector<4x256xf32>, i32 -> vector<4x256xf32>
    %11 = vector.extract_strided_slice %2 {offsets = [1, 0], sizes = [1, 256], strides = [1, 1]} : vector<9x256xf32> to vector<1x256xf32>
    %12 = vector.broadcast %11 : vector<1x256xf32> to vector<4x256xf32>
    %13 = arith.mulf %10, %12 : vector<4x256xf32>
    %c8 = arith.constant 8 : index
    %c0_8 = arith.constant 0 : index
    %14 = vector.load %arg10[%c8, %c0_8] : memref<72x256xf32, #tpu.memory_space<vmem>>, vector<4x256xf32>
    tpu.vector_store %arg10[%c8, %c0_8], %13 {strides = array<i32>} : memref<72x256xf32, #tpu.memory_space<vmem>>, vector<4x256xf32>,
    %c15_i32 = arith.constant 15 : i32
    %15 = tpu.dynamic_rotate %1 by %c15_i32 dim 1 : vector<4x256xf32>, i32 -> vector<4x256xf32>
    %16 = vector.extract_strided_slice %2 {offsets = [2, 0], sizes = [1, 256], strides = [1, 1]} : vector<9x256xf32> to vector<1x256xf32>
    %17 = vector.broadcast %16 : vector<1x256xf32> to vector<4x256xf32>
    %18 = arith.mulf %15, %17 : vector<4x256xf32>
    %c16 = arith.constant 16 : index
    %c0_9 = arith.constant 0 : index
    %19 = vector.load %arg10[%c16, %c0_9] : memref<72x256xf32, #tpu.memory_space<vmem>>, vector<4x256xf32>
    tpu.vector_store %arg10[%c16, %c0_9], %18 {strides = array<i32>} : memref<72x256xf32, #tpu.memory_space<vmem>>, vector<4x256xf32>,
    %c1_i32 = arith.constant 1 : i32
    %20 = tpu.dynamic_rotate %1 by %c1_i32 dim 1 : vector<4x256xf32>, i32 -> vector<4x256xf32>
    %21 = vector.extract_strided_slice %2 {offsets = [3, 0], sizes = [1, 256], strides = [1, 1]} : vector<9x256xf32> to vector<1x256xf32>
    %22 = vector.broadcast %21 : vector<1x256xf32> to vector<4x256xf32>
    %23 = arith.mulf %20, %22 : vector<4x256xf32>
    %c24 = arith.constant 24 : index
    %c0_10 = arith.constant 0 : index
    %24 = vector.load %arg10[%c24, %c0_10] : memref<72x256xf32, #tpu.memory_space<vmem>>, vector<4x256xf32>
    tpu.vector_store %arg10[%c24, %c0_10], %23 {strides = array<i32>} : memref<72x256xf32, #tpu.memory_space<vmem>>, vector<4x256xf32>,
    %25 = vector.extract_strided_slice %2 {offsets = [4, 0], sizes = [1, 256], strides = [1, 1]} : vector<9x256xf32> to vector<1x256xf32>
    %26 = vector.broadcast %25 : vector<1x256xf32> to vector<4x256xf32>
    %27 = arith.mulf %1, %26 : vector<4x256xf32>
    %c32 = arith.constant 32 : index
    %c0_11 = arith.constant 0 : index
    %28 = vector.load %arg10[%c32, %c0_11] : memref<72x256xf32, #tpu.memory_space<vmem>>, vector<4x256xf32>
    tpu.vector_store %arg10[%c32, %c0_11], %27 {strides = array<i32>} : memref<72x256xf32, #tpu.memory_space<vmem>>, vector<4x256xf32>,
    %c255_i32 = arith.constant 255 : i32
    %29 = tpu.dynamic_rotate %1 by %c255_i32 dim 1 : vector<4x256xf32>, i32 -> vector<4x256xf32>
    %30 = vector.extract_strided_slice %2 {offsets = [5, 0], sizes = [1, 256], strides = [1, 1]} : vector<9x256xf32> to vector<1x256xf32>
    %31 = vector.broadcast %30 : vector<1x256xf32> to vector<4x256xf32>
    %32 = arith.mulf %29, %31 : vector<4x256xf32>
    %c40 = arith.constant 40 : index
    %c0_12 = arith.constant 0 : index
    %33 = vector.load %arg10[%c40, %c0_12] : memref<72x256xf32, #tpu.memory_space<vmem>>, vector<4x256xf32>
    tpu.vector_store %arg10[%c40, %c0_12], %32 {strides = array<i32>} : memref<72x256xf32, #tpu.memory_space<vmem>>, vector<4x256xf32>,
    %c241_i32 = arith.constant 241 : i32
    %34 = tpu.dynamic_rotate %1 by %c241_i32 dim 1 : vector<4x256xf32>, i32 -> vector<4x256xf32>
    %35 = vector.extract_strided_slice %2 {offsets = [6, 0], sizes = [1, 256], strides = [1, 1]} : vector<9x256xf32> to vector<1x256xf32>
    %36 = vector.broadcast %35 : vector<1x256xf32> to vector<4x256xf32>
    %37 = arith.mulf %34, %36 : vector<4x256xf32>
    %c48 = arith.constant 48 : index
    %c0_13 = arith.constant 0 : index
    %38 = vector.load %arg10[%c48, %c0_13] : memref<72x256xf32, #tpu.memory_space<vmem>>, vector<4x256xf32>
    tpu.vector_store %arg10[%c48, %c0_13], %37 {strides = array<i32>} : memref<72x256xf32, #tpu.memory_space<vmem>>, vector<4x256xf32>,
    %c240_i32 = arith.constant 240 : i32
    %39 = tpu.dynamic_rotate %1 by %c240_i32 dim 1 : vector<4x256xf32>, i32 -> vector<4x256xf32>
    %40 = vector.extract_strided_slice %2 {offsets = [7, 0], sizes = [1, 256], strides = [1, 1]} : vector<9x256xf32> to vector<1x256xf32>
    %41 = vector.broadcast %40 : vector<1x256xf32> to vector<4x256xf32>
    %42 = arith.mulf %39, %41 : vector<4x256xf32>
    %c56 = arith.constant 56 : index
    %c0_14 = arith.constant 0 : index
    %43 = vector.load %arg10[%c56, %c0_14] : memref<72x256xf32, #tpu.memory_space<vmem>>, vector<4x256xf32>
    tpu.vector_store %arg10[%c56, %c0_14], %42 {strides = array<i32>} : memref<72x256xf32, #tpu.memory_space<vmem>>, vector<4x256xf32>,
    %c239_i32 = arith.constant 239 : i32
    %44 = tpu.dynamic_rotate %1 by %c239_i32 dim 1 : vector<4x256xf32>, i32 -> vector<4x256xf32>
    %45 = vector.extract_strided_slice %2 {offsets = [8, 0], sizes = [1, 256], strides = [1, 1]} : vector<9x256xf32> to vector<1x256xf32>
    %46 = vector.broadcast %45 : vector<1x256xf32> to vector<4x256xf32>
    %47 = arith.mulf %44, %46 : vector<4x256xf32>
    %c64 = arith.constant 64 : index
    %c0_15 = arith.constant 0 : index
    %48 = vector.load %arg10[%c64, %c0_15] : memref<72x256xf32, #tpu.memory_space<vmem>>, vector<4x256xf32>
    tpu.vector_store %arg10[%c64, %c0_15], %47 {strides = array<i32>} : memref<72x256xf32, #tpu.memory_space<vmem>>, vector<4x256xf32>,
    %c0_16 = arith.constant 0 : index
    %c0_17 = arith.constant 0 : index
    %49 = vector.load %arg3[%c0_16, %c0_17] : memref<8x72xf32, #tpu.memory_space<vmem>>, vector<8x72xf32>
    %c0_18 = arith.constant 0 : index
    %c0_19 = arith.constant 0 : index
    %50 = vector.load %arg10[%c0_18, %c0_19] : memref<72x256xf32, #tpu.memory_space<vmem>>, vector<72x256xf32>
    %cst_20 = arith.constant dense<0.000000e+00> : vector<8x256xf32>
    %51 = tpu.matmul %49, %50, %cst_20 {dimension_numbers = #tpu.dot_dimension_numbers<[1], [0], [0], [1], [0, 0, 1, 1], [], []>} : vector<8x72xf32>, vector<72x256xf32>, vector<8x256xf32> -> vector<8x256xf32>
    %c0_21 = arith.constant 0 : index
    %c0_22 = arith.constant 0 : index
    %52 = vector.load %arg4[%c0_21, %c0_22] : memref<8x1xf32, #tpu.memory_space<vmem>>, vector<8x1xf32>
    %53 = vector.broadcast %52 : vector<8x1xf32> to vector<8x256xf32>
    %54 = arith.addf %51, %53 : vector<8x256xf32>
    %cst_23 = arith.constant 0.000000e+00 : f32
    %55 = vector.broadcast %cst_23 : f32 to vector<8x256xf32>
    %56 = arith.maximumf %54, %55 : vector<8x256xf32>
    %c0_24 = arith.constant 0 : index
    %c0_25 = arith.constant 0 : index
    %57 = vector.load %arg5[%c0_24, %c0_25] : memref<8x8xf32, #tpu.memory_space<vmem>>, vector<8x8xf32>
    %cst_26 = arith.constant dense<0.000000e+00> : vector<8x256xf32>
    %58 = tpu.matmul %57, %56, %cst_26 {dimension_numbers = #tpu.dot_dimension_numbers<[1], [0], [0], [1], [0, 0, 1, 1], [], []>} : vector<8x8xf32>, vector<8x256xf32>, vector<8x256xf32> -> vector<8x256xf32>
    %c0_27 = arith.constant 0 : index
    %c0_28 = arith.constant 0 : index
    %59 = vector.load %arg6[%c0_27, %c0_28] : memref<8x1xf32, #tpu.memory_space<vmem>>, vector<8x1xf32>
    %60 = vector.broadcast %59 : vector<8x1xf32> to vector<8x256xf32>
    %61 = arith.addf %58, %60 : vector<8x256xf32>
    %cst_29 = arith.constant 0.000000e+00 : f32
    %62 = vector.broadcast %cst_29 : f32 to vector<8x256xf32>
    %63 = arith.maximumf %61, %62 : vector<8x256xf32>
    %c0_30 = arith.constant 0 : index
    %c0_31 = arith.constant 0 : index
    %64 = vector.load %arg7[%c0_30, %c0_31] : memref<8x8xf32, #tpu.memory_space<vmem>>, vector<8x8xf32>
    %cst_32 = arith.constant dense<0.000000e+00> : vector<8x256xf32>
    %65 = tpu.matmul %64, %63, %cst_32 {dimension_numbers = #tpu.dot_dimension_numbers<[1], [0], [0], [1], [0, 0, 1, 1], [], []>} : vector<8x8xf32>, vector<8x256xf32>, vector<8x256xf32> -> vector<8x256xf32>
    %c0_33 = arith.constant 0 : index
    %c0_34 = arith.constant 0 : index
    %66 = vector.load %arg8[%c0_33, %c0_34] : memref<8x1xf32, #tpu.memory_space<vmem>>, vector<8x1xf32>
    %67 = vector.broadcast %66 : vector<8x1xf32> to vector<8x256xf32>
    %68 = arith.addf %65, %67 : vector<8x256xf32>
    %cst_35 = arith.constant 0.000000e+00 : f32
    %69 = vector.broadcast %cst_35 : f32 to vector<8x256xf32>
    %70 = arith.maximumf %68, %69 : vector<8x256xf32>
    %c0_36 = arith.constant 0 : index
    %c0_37 = arith.constant 0 : index
    %c0_38 = arith.constant 0 : index
    %71 = vector.load %arg9[%c0_36, %c0_37, %c0_38] : memref<1x8x256xf32, #tpu.memory_space<vmem>>, vector<1x8x256xf32>
    %72 = vector.shape_cast %71 : vector<1x8x256xf32> to vector<8x256xf32>
    %73 = vector.shape_cast %70 : vector<8x256xf32> to vector<1x8x256xf32>
    tpu.vector_store %arg9[%c0_36, %c0_37, %c0_38], %73 {strides = array<i32>} : memref<1x8x256xf32, #tpu.memory_space<vmem>>, vector<1x8x256xf32>,
    return
  }
  func.func @transform_0(%arg0: i32) -> (i32, i32, i32) {
    %c0_i32 = arith.constant 0 : i32
    %c0_i32_0 = arith.constant 0 : i32
    %c0_i32_1 = arith.constant 0 : i32
    return %arg0, %c0_i32, %c0_i32_0 : i32, i32, i32
  }
  func.func @transform_1(%arg0: i32) -> (i32, i32) {
    %c0_i32 = arith.constant 0 : i32
    %c0_i32_0 = arith.constant 0 : i32
    %c0_i32_1 = arith.constant 0 : i32
    return %c0_i32, %c0_i32_0 : i32, i32
  }
  func.func @transform_2(%arg0: i32) -> (i32, i32) {
    %c0_i32 = arith.constant 0 : i32
    %c0_i32_0 = arith.constant 0 : i32
    %c0_i32_1 = arith.constant 0 : i32
    return %c0_i32, %c0_i32_0 : i32, i32
  }
  func.func @transform_3(%arg0: i32) -> (i32, i32) {
    %c0_i32 = arith.constant 0 : i32
    %c0_i32_0 = arith.constant 0 : i32
    %c0_i32_1 = arith.constant 0 : i32
    return %c0_i32, %c0_i32_0 : i32, i32
  }
  func.func @transform_4(%arg0: i32) -> (i32, i32) {
    %c0_i32 = arith.constant 0 : i32
    %c0_i32_0 = arith.constant 0 : i32
    %c0_i32_1 = arith.constant 0 : i32
    return %c0_i32, %c0_i32_0 : i32, i32
  }
  func.func @transform_5(%arg0: i32) -> (i32, i32) {
    %c0_i32 = arith.constant 0 : i32
    %c0_i32_0 = arith.constant 0 : i32
    %c0_i32_1 = arith.constant 0 : i32
    return %c0_i32, %c0_i32_0 : i32, i32
  }
  func.func @transform_6(%arg0: i32) -> (i32, i32) {
    %c0_i32 = arith.constant 0 : i32
    %c0_i32_0 = arith.constant 0 : i32
    %c0_i32_1 = arith.constant 0 : i32
    return %c0_i32, %c0_i32_0 : i32, i32
  }
  func.func @transform_7(%arg0: i32) -> (i32, i32) {
    %c0_i32 = arith.constant 0 : i32
    %c0_i32_0 = arith.constant 0 : i32
    %c0_i32_1 = arith.constant 0 : i32
    return %c0_i32, %c0_i32_0 : i32, i32
  }
  func.func @transform_8(%arg0: i32) -> (i32, i32, i32) {
    %c0_i32 = arith.constant 0 : i32
    %c0_i32_0 = arith.constant 0 : i32
    %c0_i32_1 = arith.constant 0 : i32
    return %arg0, %c0_i32, %c0_i32_0 : i32, i32, i32
  }
}

</mosaic_0001>

<llo_original>
// kernel: decode_pallas.1
$region0: #{decode_pallas.1}
  #allocation0 [shape = 'u32[]', space=smem, size = 0x4, offset = 0x4, fixed_abs, tag = 'smem constant byte address 0x4 - core index']
  #allocation1 [shape = 'u32[72,128]{1,0:T(1,128)}', space=vmem, size = 0x9000, scoped, tag = 'internal scratch']
  #allocation2 [shape = 'f32[72,256]{1,0:T(8,128)}', space=vmem, size = 0x12000, scoped, tag = 'scratch operand']
  %s0 = inlined_call_operand.vmem [shape: f32[2,4,256], index: 0, kind: input, shape index: {}]
  %s1 = inlined_call_operand.vmem [shape: f32[9,256], index: 1, kind: input, shape index: {}]
  %s2 = inlined_call_operand.vmem [shape: f32[8,72], index: 2, kind: input, shape index: {}]
  %s3 = inlined_call_operand.vmem [shape: f32[8,1], index: 3, kind: input, shape index: {}]
  %s4 = inlined_call_operand.vmem [shape: f32[8,8], index: 4, kind: input, shape index: {}]
  %s5 = inlined_call_operand.vmem [shape: f32[8,1], index: 5, kind: input, shape index: {}]
  %s6 = inlined_call_operand.vmem [shape: f32[8,8], index: 6, kind: input, shape index: {}]
  %s7 = inlined_call_operand.vmem [shape: f32[8,1], index: 7, kind: input, shape index: {}]
  %s8 = inlined_call_operand.vmem [shape: f32[2,8,256], index: 8, kind: output, shape index: {}]
  %s9 = sld [smem:[#allocation0]]
  $region65: #{decode_pallas.1} parent=0
    _
  %s11 = ssub.s32 1, %s9
  %s12 = scalar_select 0, %s11, %s9
  loop: start=0, step=1, limit=4
  $region2: #{decode_pallas.1} parent=0 // loop_pre_header
    _
  $region3: #{decode_pallas.1} parent=0 // loop_header
    %s14 = sphi 0, %s18
    %p15 = scmp.ge.s32.totalorder %s14, 4
    %s24 = sphi 0, %s26
    %s27 = sphi 0, %s24
    %s28 = sphi 0, %s27
    %s44 = sphi 0, %s28
    %s48 = sphi 0, %s48
    %s50 = sphi 0, %s48
    %s51 = sphi 0, %s50
    %s65 = sphi 0, %s51
    %s69 = sphi 0, %s69
    %s71 = sphi 0, %s69
    %s72 = sphi 0, %s71
    %s86 = sphi 0, %s72
    %s90 = sphi 0, %s90
    %s92 = sphi 0, %s90
    %s93 = sphi 0, %s92
    %s107 = sphi 0, %s93
    %s111 = sphi 0, %s111
    %s113 = sphi 0, %s111
    %s114 = sphi 0, %s113
    %s128 = sphi 0, %s114
    %s132 = sphi 0, %s132
    %s134 = sphi 0, %s132
    %s135 = sphi 0, %s134
    %s149 = sphi 0, %s135
    %s153 = sphi 0, %s153
    %s155 = sphi 0, %s153
    %s156 = sphi 0, %s155
    %s170 = sphi 0, %s156
    %s174 = sphi 0, %s174
    %s176 = sphi 0, %s174
    %s177 = sphi 0, %s176
    %s191 = sphi 0, %s177
    %s197 = sphi 0, %s199
    %s200 = sphi 0, %s197
    %s201 = sphi 0, %s200
    %s217 = sphi 0, %s201
  $region4: #{decode_pallas.1} parent=0 // loop_header_branch
    %17 = sbr.rel (%p15) target = $region8
  $region5: #{decode_pallas.1} parent=0 // loop_body
    %s19 = ssub.s32 %s14, 1
    %s20 = ssub.s32 %s14, 2
    %s21 = sadd.s32 %s14, 1
    %s22 = ssub.s32 %s14, %s21
    %p23 = scmp.eq.s32.totalorder %s22, 0
    %s25 = sadd.s32 %s24, 1
    %s26 = scalar_select %p23, %s24, %s25
    %p29 = pneg %p23
    %p30 = scmp.eq.s32.totalorder %s14, 1
    %p31 = por %p29, %p30
    %p32 = scmp.ne.s32.totalorder %s24, %s27
    %p33 = scmp.eq.s32.totalorder %s14, 0
    %p34 = por %p32, %p33
    %p35 = scmp.ne.s32.totalorder %s24, %s27
    %p36 = scmp.eq.s32.totalorder %s19, 1
    %p37 = por %p35, %p36
    %p38 = scmp.ne.s32.totalorder %s27, %s28
    %p39 = scmp.eq.s32.totalorder %s19, 0
    %p40 = por %p38, %p39
    %p41 = scmp.ne.s32.totalorder %s27, %s28
    %p42 = scmp.eq.s32.totalorder %s20, 1
    %p43 = por %p41, %p42
    %p45 = scmp.ne.s32.totalorder %s28, %s44
    %p46 = scmp.eq.s32.totalorder %s20, 0
    %p47 = por %p45, %p46
    %s49 = sadd.s32 %s48, 1
    %p52 = scmp.eq.s32.totalorder %s14, 1
    %p53 = scmp.ne.s32.totalorder %s48, %s50
    %p54 = scmp.eq.s32.totalorder %s14, 0
    %p55 = por %p53, %p54
    %p56 = scmp.ne.s32.totalorder %s48, %s50
    %p57 = scmp.eq.s32.totalorder %s19, 1
    %p58 = por %p56, %p57
    %p59 = scmp.ne.s32.totalorder %s50, %s51
    %p60 = scmp.eq.s32.totalorder %s19, 0
    %p61 = por %p59, %p60
    %p62 = scmp.ne.s32.totalorder %s50, %s51
    %p63 = scmp.eq.s32.totalorder %s20, 1
    %p64 = por %p62, %p63
    %p66 = scmp.ne.s32.totalorder %s51, %s65
    %p67 = scmp.eq.s32.totalorder %s20, 0
    %p68 = por %p66, %p67
    %s70 = sadd.s32 %s69, 1
    %p73 = scmp.eq.s32.totalorder %s14, 1
    %p74 = scmp.ne.s32.totalorder %s69, %s71
    %p75 = scmp.eq.s32.totalorder %s14, 0
    %p76 = por %p74, %p75
    %p77 = scmp.ne.s32.totalorder %s69, %s71
    %p78 = scmp.eq.s32.totalorder %s19, 1
    %p79 = por %p77, %p78
    %p80 = scmp.ne.s32.totalorder %s71, %s72
    %p81 = scmp.eq.s32.totalorder %s19, 0
    %p82 = por %p80, %p81
    %p83 = scmp.ne.s32.totalorder %s71, %s72
    %p84 = scmp.eq.s32.totalorder %s20, 1
    %p85 = por %p83, %p84
    %p87 = scmp.ne.s32.totalorder %s72, %s86
    %p88 = scmp.eq.s32.totalorder %s20, 0
    %p89 = por %p87, %p88
    %s91 = sadd.s32 %s90, 1
    %p94 = scmp.eq.s32.totalorder %s14, 1
    %p95 = scmp.ne.s32.totalorder %s90, %s92
    %p96 = scmp.eq.s32.totalorder %s14, 0
    %p97 = por %p95, %p96
    %p98 = scmp.ne.s32.totalorder %s90, %s92
    %p99 = scmp.eq.s32.totalorder %s19, 1
    %p100 = por %p98, %p99
    %p101 = scmp.ne.s32.totalorder %s92, %s93
    %p102 = scmp.eq.s32.totalorder %s19, 0
    %p103 = por %p101, %p102
    %p104 = scmp.ne.s32.totalorder %s92, %s93
    %p105 = scmp.eq.s32.totalorder %s20, 1
    %p106 = por %p104, %p105
    %p108 = scmp.ne.s32.totalorder %s93, %s107
    %p109 = scmp.eq.s32.totalorder %s20, 0
    %p110 = por %p108, %p109
    %s112 = sadd.s32 %s111, 1
    %p115 = scmp.eq.s32.totalorder %s14, 1
    %p116 = scmp.ne.s32.totalorder %s111, %s113
    %p117 = scmp.eq.s32.totalorder %s14, 0
    %p118 = por %p116, %p117
    %p119 = scmp.ne.s32.totalorder %s111, %s113
    %p120 = scmp.eq.s32.totalorder %s19, 1
    %p121 = por %p119, %p120
    %p122 = scmp.ne.s32.totalorder %s113, %s114
    %p123 = scmp.eq.s32.totalorder %s19, 0
    %p124 = por %p122, %p123
    %p125 = scmp.ne.s32.totalorder %s113, %s114
    %p126 = scmp.eq.s32.totalorder %s20, 1
    %p127 = por %p125, %p126
    %p129 = scmp.ne.s32.totalorder %s114, %s128
    %p130 = scmp.eq.s32.totalorder %s20, 0
    %p131 = por %p129, %p130
    %s133 = sadd.s32 %s132, 1
    %p136 = scmp.eq.s32.totalorder %s14, 1
    %p137 = scmp.ne.s32.totalorder %s132, %s134
    %p138 = scmp.eq.s32.totalorder %s14, 0
    %p139 = por %p137, %p138
    %p140 = scmp.ne.s32.totalorder %s132, %s134
    %p141 = scmp.eq.s32.totalorder %s19, 1
    %p142 = por %p140, %p141
    %p143 = scmp.ne.s32.totalorder %s134, %s135
    %p144 = scmp.eq.s32.totalorder %s19, 0
    %p145 = por %p143, %p144
    %p146 = scmp.ne.s32.totalorder %s134, %s135
    %p147 = scmp.eq.s32.totalorder %s20, 1
    %p148 = por %p146, %p147
    %p150 = scmp.ne.s32.totalorder %s135, %s149
    %p151 = scmp.eq.s32.totalorder %s20, 0
    %p152 = por %p150, %p151
    %s154 = sadd.s32 %s153, 1
    %p157 = scmp.eq.s32.totalorder %s14, 1
    %p158 = scmp.ne.s32.totalorder %s153, %s155
    %p159 = scmp.eq.s32.totalorder %s14, 0
    %p160 = por %p158, %p159
    %p161 = scmp.ne.s32.totalorder %s153, %s155
    %p162 = scmp.eq.s32.totalorder %s19, 1
    %p163 = por %p161, %p162
    %p164 = scmp.ne.s32.totalorder %s155, %s156
    %p165 = scmp.eq.s32.totalorder %s19, 0
    %p166 = por %p164, %p165
    %p167 = scmp.ne.s32.totalorder %s155, %s156
    %p168 = scmp.eq.s32.totalorder %s20, 1
    %p169 = por %p167, %p168
    %p171 = scmp.ne.s32.totalorder %s156, %s170
    %p172 = scmp.eq.s32.totalorder %s20, 0
    %p173 = por %p171, %p172
    %s175 = sadd.s32 %s174, 1
    %p178 = scmp.eq.s32.totalorder %s14, 1
    %p179 = scmp.ne.s32.totalorder %s174, %s176
    %p180 = scmp.eq.s32.totalorder %s14, 0
    %p181 = por %p179, %p180
    %p182 = scmp.ne.s32.totalorder %s174, %s176
    %p183 = scmp.eq.s32.totalorder %s19, 1
    %p184 = por %p182, %p183
    %p185 = scmp.ne.s32.totalorder %s176, %s177
    %p186 = scmp.eq.s32.totalorder %s19, 0
    %p187 = por %p185, %p186
    %p188 = scmp.ne.s32.totalorder %s176, %s177
    %p189 = scmp.eq.s32.totalorder %s20, 1
    %p190 = por %p188, %p189
    %p192 = scmp.ne.s32.totalorder %s177, %s191
    %p193 = scmp.eq.s32.totalorder %s20, 0
    %p194 = por %p192, %p193
    %s195 = ssub.s32 %s14, %s21
    %p196 = scmp.eq.s32.totalorder %s195, 0
    %s198 = sadd.s32 %s197, 1
    %s199 = scalar_select %p196, %s197, %s198
    %p202 = pneg %p196
    %p203 = scmp.eq.s32.totalorder %s14, 1
    %p204 = por %p202, %p203
    %p205 = scmp.ne.s32.totalorder %s197, %s200
    %p206 = scmp.eq.s32.totalorder %s14, 0
    %p207 = por %p205, %p206
    %p208 = scmp.ne.s32.totalorder %s197, %s200
    %p209 = scmp.eq.s32.totalorder %s19, 1
    %p210 = por %p208, %p209
    %p211 = scmp.ne.s32.totalorder %s200, %s201
    %p212 = scmp.eq.s32.totalorder %s19, 0
    %p213 = por %p211, %p212
    %p214 = scmp.ne.s32.totalorder %s200, %s201
    %p215 = scmp.eq.s32.totalorder %s20, 1
    %p216 = por %p214, %p215
    %p218 = scmp.ne.s32.totalorder %s201, %s217
    %p219 = scmp.eq.s32.totalorder %s20, 0
    %p220 = por %p218, %p219
    %p221 = scmp.le.s32.totalorder 1, %s14
    %p222 = scmp.lt.s32.totalorder %s14, 3
    %p223 = pnand %p221, %p222
    %p224 = pneg %p223
    // Predicated region
    $region9: #{decode_pallas.1} parent=5 // pred_check
      _
    $region10: #{decode_pallas.1} parent=5 // pred_check_branch
      %226 = sbr.rel (%p223) target = $region12
    $region11: #{decode_pallas.1} parent=5 // pred_region
      %s227 = ssub.s32 %s14, 1
      // Predicated region
      $region13: #{decode_pallas.1} parent=11 // pred_check
        %p228 = pneg %p61
      $region14: #{decode_pallas.1} parent=11 // pred_check_branch
        %230 = sbr.rel (%p228) target = $region16
      $region15: #{decode_pallas.1} parent=11 // pred_region
        _
      $region16: #{decode_pallas.1} parent=11 // pred_fallthru
        _
      // Predicated region
      $region17: #{decode_pallas.1} parent=11 // pred_check
        %p231 = pneg %p82
      $region18: #{decode_pallas.1} parent=11 // pred_check_branch
        %233 = sbr.rel (%p231) target = $region20
      $region19: #{decode_pallas.1} parent=11 // pred_region
        _
      $region20: #{decode_pallas.1} parent=11 // pred_fallthru
        _
      // Predicated region
      $region21: #{decode_pallas.1} parent=11 // pred_check
        %p234 = pneg %p103
      $region22: #{decode_pallas.1} parent=11 // pred_check_branch
        %236 = sbr.rel (%p234) target = $region24
      $region23: #{decode_pallas.1} parent=11 // pred_region
        _
      $region24: #{decode_pallas.1} parent=11 // pred_fallthru
        _
      // Predicated region
      $region25: #{decode_pallas.1} parent=11 // pred_check
        %p237 = pneg %p124
      $region26: #{decode_pallas.1} parent=11 // pred_check_branch
        %239 = sbr.rel (%p237) target = $region28
      $region27: #{decode_pallas.1} parent=11 // pred_region
        _
      $region28: #{decode_pallas.1} parent=11 // pred_fallthru
        _
      // Predicated region
      $region29: #{decode_pallas.1} parent=11 // pred_check
        %p240 = pneg %p145
      $region30: #{decode_pallas.1} parent=11 // pred_check_branch
        %242 = sbr.rel (%p240) target = $region32
      $region31: #{decode_pallas.1} parent=11 // pred_region
        _
      $region32: #{decode_pallas.1} parent=11 // pred_fallthru
        _
      // Predicated region
      $region33: #{decode_pallas.1} parent=11 // pred_check
        %p243 = pneg %p166
      $region34: #{decode_pallas.1} parent=11 // pred_check_branch
        %245 = sbr.rel (%p243) target = $region36
      $region35: #{decode_pallas.1} parent=11 // pred_region
        _
      $region36: #{decode_pallas.1} parent=11 // pred_fallthru
        _
      // Predicated region
      $region37: #{decode_pallas.1} parent=11 // pred_check
        %p246 = pneg %p187
      $region38: #{decode_pallas.1} parent=11 // pred_check_branch
        %248 = sbr.rel (%p246) target = $region40
      $region39: #{decode_pallas.1} parent=11 // pred_region
        _
      $region40: #{decode_pallas.1} parent=11 // pred_fallthru
        _
    $region12: #{decode_pallas.1} parent=5 // pred_fallthru
      _
    %p249 = scmp.lt.s32.totalorder %s14, 2
    // Predicated region
    $region41: #{decode_pallas.1} parent=5 // pred_check
      %p250 = pneg %p249
    $region42: #{decode_pallas.1} parent=5 // pred_check_branch
      %252 = sbr.rel (%p250) target = $region44
    $region43: #{decode_pallas.1} parent=5 // pred_region
      // Predicated region
      $region45: #{decode_pallas.1} parent=43 // pred_check
        %p253 = pneg %p34
      $region46: #{decode_pallas.1} parent=43 // pred_check_branch
        %255 = sbr.rel (%p253) target = $region48
      $region47: #{decode_pallas.1} parent=43 // pred_region
        %p256 = scmp.lt.s32.totalorder %s14, 1
        %s257 = scalar_select %p256, %s14, 1
        %s258 = smul.addr %s257, 2
        %s259 = smul.addr %s258, 4
        %s260 = scalar_lea.vmem %s0, %s259
      $region48: #{decode_pallas.1} parent=43 // pred_fallthru
        _
    $region44: #{decode_pallas.1} parent=5 // pred_fallthru
      _
    %p261 = scmp.le.s32.totalorder 1, %s14
    %p262 = scmp.lt.s32.totalorder %s14, 3
    %p263 = pnand %p261, %p262
    %p264 = pneg %p263
    // Predicated region
    $region49: #{decode_pallas.1} parent=5 // pred_check
      _
    $region50: #{decode_pallas.1} parent=5 // pred_check_branch
      %266 = sbr.rel (%p263) target = $region52
    $region51: #{decode_pallas.1} parent=5 // pred_region
      %s267 = ssub.s32 %s14, 1
      %p268 = scmp.lt.s32.totalorder %s19, 1
      %s269 = scalar_select %p268, %s19, 1
      %s270 = smul.addr %s269, 2
      %s271 = smul.addr %s270, 4
      %s272 = scalar_lea.vmem %s0, %s271
      %p273 = pneg %p40
      %p274 = pneg %p37
      %p275 = pneg %p61
      %p276 = pneg %p58
      %p277 = pneg %p82
      %p278 = pneg %p79
      %p279 = pneg %p103
      %p280 = pneg %p100
      %p281 = pneg %p124
      %p282 = pneg %p121
      %p283 = pneg %p145
      %p284 = pneg %p142
      %p285 = pneg %p166
      %p286 = pneg %p163
      %p287 = pneg %p187
      %p288 = pneg %p184
      %p289 = pneg %p213
      %p290 = pneg %p210
      %p291 = scmp.lt.s32.totalorder %s19, 1
      %s292 = scalar_select %p291, %s19, 1
      %s293 = smul.addr %s292, 2
      %s294 = smul.addr %s293, 8
      %s295 = scalar_lea.vmem %s8, %s294
      %p296 = scmp.lt.s32.totalorder %s19, 1
      %s297 = scalar_select %p296, %s19, 1
      %s298 = smul.addr %s297, 2
      %s299 = smul.addr %s298, 4
      %s300 = scalar_lea.vmem %s0, %s299
      %p301 = scmp.lt.s32.totalorder %s19, 1
      %s302 = scalar_select %p301, %s19, 1
      %s303 = smul.addr %s302, 2
      %s304 = smul.addr %s303, 8
      %s305 = scalar_lea.vmem %s8, %s304
      %v306 = vld [vmem:[%s300] sm:$0xff]
      %v307 = vld [vmem:[%s1] sm:$0xff]
      %v308 = vld [vmem:[%s1 + $0x8] sm:$0xff]
      %v309 = vld [vmem:[%s1 + $0x10] sm:$0x1]
      %v310 = vld [vmem:[%s1 + $0x18] sm:$0x1]
      %311 = vst [vmem:[#allocation2] sm:$0xff] 0.0
      %312 = vst [vmem:[#allocation2 + $0x8] sm:$0xff] 0.0
      %313 = vst [vmem:[#allocation2 + $0x10] sm:$0xff] 0.0
      %314 = vst [vmem:[#allocation2 + $0x18] sm:$0xff] 0.0
      %315 = vst [vmem:[#allocation2 + $0x20] sm:$0xff] 0.0
      %316 = vst [vmem:[#allocation2 + $0x28] sm:$0xff] 0.0
      %317 = vst [vmem:[#allocation2 + $0x30] sm:$0xff] 0.0
      %318 = vst [vmem:[#allocation2 + $0x38] sm:$0xff] 0.0
      %319 = vst [vmem:[#allocation2 + $0x40] sm:$0xff] 0.0
      %320 = vst [vmem:[#allocation2 + $0x48] sm:$0xff] 0.0
      %321 = vst [vmem:[#allocation2 + $0x50] sm:$0xff] 0.0
      %322 = vst [vmem:[#allocation2 + $0x58] sm:$0xff] 0.0
      %323 = vst [vmem:[#allocation2 + $0x60] sm:$0xff] 0.0
      %324 = vst [vmem:[#allocation2 + $0x68] sm:$0xff] 0.0
      %325 = vst [vmem:[#allocation2 + $0x70] sm:$0xff] 0.0
      %326 = vst [vmem:[#allocation2 + $0x78] sm:$0xff] 0.0
      %327 = vst [vmem:[#allocation2 + $0x80] sm:$0xff] 0.0
      %328 = vst [vmem:[#allocation2 + $0x88] sm:$0xff] 0.0
      %330 = vst [vmem:[#allocation1] ss:$2 sm:$0xff] %v306
      %v331 = vld.sshfl [vmem:[#allocation1] sm:$0xff pattern:$0x75316420]
      %v332 = vld.sshfl [vmem:[#allocation1 + $0x8] sm:$0xff pattern:$0x75316420]
      %335 = vrot.lane.b32.xlu0 %v331, 17
      %v336 = vpop.permute.xlu0 %335
      %337 = vrot.lane.b32.xlu0 %v332, 17
      %v338 = vpop.permute.xlu0 %337
      %v339 = vlaneseq
      %v340 = vand.u32 %v339, 127
      %vm341 = vcmp.lt.s32.totalorder %v340, 17
      %v342 = vsel %vm341, %v336, %v338
      %v343 = vsel %vm341, %v338, %v336
      %v344 = vperm.slane %v307, 0
      %v345 = vperm.slane %v308, 0
      %v346 = vmul.f32 %v343, %v344
      %v347 = vmul.f32 %v342, %v345
      %348 = vst [vmem:[#allocation2] sm:$0xf] %v346
      %349 = vst [vmem:[#allocation2 + $0x8] sm:$0xf] %v347
      %350 = vst [vmem:[#allocation1] ss:$2 sm:$0xff] %v306
      %v351 = vld.sshfl [vmem:[#allocation1] sm:$0xff pattern:$0x75316420]
      %v352 = vld.sshfl [vmem:[#allocation1 + $0x8] sm:$0xff pattern:$0x75316420]
      %355 = vrot.lane.b32.xlu0 %v351, 16
      %v356 = vpop.permute.xlu0 %355
      %357 = vrot.lane.b32.xlu0 %v352, 16
      %v358 = vpop.permute.xlu0 %357
      %vm359 = vcmp.lt.s32.totalorder %v340, 16
      %v360 = vsel %vm359, %v356, %v358
      %v361 = vsel %vm359, %v358, %v356
      %v362 = vperm.slane %v307, 1
      %v363 = vperm.slane %v308, 1
      %v364 = vmul.f32 %v361, %v362
      %v365 = vmul.f32 %v360, %v363
      %366 = vst [vmem:[#allocation2 + $0x10] sm:$0xf] %v364
      %367 = vst [vmem:[#allocation2 + $0x18] sm:$0xf] %v365
      %368 = vst [vmem:[#allocation1] ss:$2 sm:$0xff] %v306
      %v369 = vld.sshfl [vmem:[#allocation1] sm:$0xff pattern:$0x75316420]
      %v370 = vld.sshfl [vmem:[#allocation1 + $0x8] sm:$0xff pattern:$0x75316420]
      %373 = vrot.lane.b32.xlu0 %v369, 15
      %v374 = vpop.permute.xlu0 %373
      %375 = vrot.lane.b32.xlu0 %v370, 15
      %v376 = vpop.permute.xlu0 %375
      %vm377 = vcmp.lt.s32.totalorder %v340, 15
      %v378 = vsel %vm377, %v374, %v376
      %v379 = vsel %vm377, %v376, %v374
      %v380 = vperm.slane %v307, 2
      %v381 = vperm.slane %v308, 2
      %v382 = vmul.f32 %v379, %v380
      %v383 = vmul.f32 %v378, %v381
      %384 = vst [vmem:[#allocation2 + $0x20] sm:$0xf] %v382
      %385 = vst [vmem:[#allocation2 + $0x28] sm:$0xf] %v383
      %386 = vst [vmem:[#allocation1] ss:$2 sm:$0xff] %v306
      %v387 = vld.sshfl [vmem:[#allocation1] sm:$0xff pattern:$0x75316420]
      %v388 = vld.sshfl [vmem:[#allocation1 + $0x8] sm:$0xff pattern:$0x75316420]
      %391 = vrot.lane.b32.xlu0 %v387, 1
      %v392 = vpop.permute.xlu0 %391
      %393 = vrot.lane.b32.xlu0 %v388, 1
      %v394 = vpop.permute.xlu0 %393
      %vm395 = vcmp.lt.s32.totalorder %v340, 1
      %v396 = vsel %vm395, %v392, %v394
      %v397 = vsel %vm395, %v394, %v392
      %v398 = vperm.slane %v307, 3
      %v399 = vperm.slane %v308, 3
      %v400 = vmul.f32 %v397, %v398
      %v401 = vmul.f32 %v396, %v399
      %402 = vst [vmem:[#allocation2 + $0x30] sm:$0xf] %v400
      %403 = vst [vmem:[#allocation2 + $0x38] sm:$0xf] %v401
      %v404 = vperm.slane %v307, 4
      %v405 = vperm.slane %v308, 4
      %v408 = vrot.slane %v405, 4
      %vm409 = vcmask 1043456
      %v410 = vsel %vm409, %v404, %v408
      %v412 = vmul.f32 %v306, %v410
      %414 = vst [vmem:[#allocation1] ss:$2 sm:$0xff] %v412
      %v415 = vld.sshfl [vmem:[#allocation1] sm:$0xff pattern:$0x75316420]
      %v416 = vld.sshfl [vmem:[#allocation1 + $0x8] sm:$0xff pattern:$0x75316420]
      %419 = vst [vmem:[#allocation2 + $0x40] sm:$0xf] %v415
      %420 = vst [vmem:[#allocation2 + $0x48] sm:$0xf] %v416
      %421 = vst [vmem:[#allocation1] ss:$2 sm:$0xff] %v306
      %v422 = vld.sshfl [vmem:[#allocation1] sm:$0xff pattern:$0x75316420]
      %v423 = vld.sshfl [vmem:[#allocation1 + $0x8] sm:$0xff pattern:$0x75316420]
      %426 = vrot.lane.b32.xlu0 %v422, 127
      %v427 = vpop.permute.xlu0 %426
      %428 = vrot.lane.b32.xlu0 %v423, 127
      %v429 = vpop.permute.xlu0 %428
      %vm430 = vcmp.lt.s32.totalorder %v340, 127
      %v431 = vsel %vm430, %v427, %v429
      %v432 = vsel %vm430, %v429, %v427
      %v433 = vperm.slane %v307, 5
      %v434 = vperm.slane %v308, 5
      %v435 = vmul.f32 %v431, %v433
      %v436 = vmul.f32 %v432, %v434
      %437 = vst [vmem:[#allocation2 + $0x50] sm:$0xf] %v435
      %438 = vst [vmem:[#allocation2 + $0x58] sm:$0xf] %v436
      %439 = vst [vmem:[#allocation1] ss:$2 sm:$0xff] %v306
      %v440 = vld.sshfl [vmem:[#allocation1] sm:$0xff pattern:$0x75316420]
      %v441 = vld.sshfl [vmem:[#allocation1 + $0x8] sm:$0xff pattern:$0x75316420]
      %444 = vrot.lane.b32.xlu0 %v440, 113
      %v445 = vpop.permute.xlu0 %444
      %446 = vrot.lane.b32.xlu0 %v441, 113
      %v447 = vpop.permute.xlu0 %446
      %vm448 = vcmp.lt.s32.totalorder %v340, 113
      %v449 = vsel %vm448, %v445, %v447
      %v450 = vsel %vm448, %v447, %v445
      %v451 = vperm.slane %v307, 6
      %v452 = vperm.slane %v308, 6
      %v453 = vmul.f32 %v449, %v451
      %v454 = vmul.f32 %v450, %v452
      %455 = vst [vmem:[#allocation2 + $0x60] sm:$0xf] %v453
      %456 = vst [vmem:[#allocation2 + $0x68] sm:$0xf] %v454
      %457 = vst [vmem:[#allocation1] ss:$2 sm:$0xff] %v306
      %v458 = vld.sshfl [vmem:[#allocation1] sm:$0xff pattern:$0x75316420]
      %v459 = vld.sshfl [vmem:[#allocation1 + $0x8] sm:$0xff pattern:$0x75316420]
      %462 = vrot.lane.b32.xlu0 %v458, 112
      %v463 = vpop.permute.xlu0 %462
      %464 = vrot.lane.b32.xlu0 %v459, 112
      %v465 = vpop.permute.xlu0 %464
      %vm466 = vcmp.lt.s32.totalorder %v340, 112
      %v467 = vsel %vm466, %v463, %v465
      %v468 = vsel %vm466, %v465, %v463
      %v469 = vperm.slane %v307, 7
      %v470 = vperm.slane %v308, 7
      %v471 = vmul.f32 %v467, %v469
      %v472 = vmul.f32 %v468, %v470
      %473 = vst [vmem:[#allocation2 + $0x70] sm:$0xf] %v471
      %474 = vst [vmem:[#allocation2 + $0x78] sm:$0xf] %v472
      %475 = vst [vmem:[#allocation1] ss:$2 sm:$0xff] %v306
      %v476 = vld.sshfl [vmem:[#allocation1] sm:$0xff pattern:$0x75316420]
      %v477 = vld.sshfl [vmem:[#allocation1 + $0x8] sm:$0xff pattern:$0x75316420]
      %480 = vrot.lane.b32.xlu0 %v476, 111
      %v481 = vpop.permute.xlu0 %480
      %482 = vrot.lane.b32.xlu0 %v477, 111
      %v483 = vpop.permute.xlu0 %482
      %vm484 = vcmp.lt.s32.totalorder %v340, 111
      %v485 = vsel %vm484, %v481, %v483
      %v486 = vsel %vm484, %v483, %v481
      %v487 = vperm.slane %v309, 0
      %v488 = vperm.slane %v310, 0
      %v489 = vmul.f32 %v485, %v487
      %v490 = vmul.f32 %v486, %v488
      %491 = vst [vmem:[#allocation2 + $0x80] sm:$0xf] %v489
      %492 = vst [vmem:[#allocation2 + $0x88] sm:$0xf] %v490
      %v493 = vld [vmem:[%s2] sm:$0xff]
      %v494 = vld [vmem:[#allocation2] sm:$0xff]
      %v495 = vld [vmem:[#allocation2 + $0x8] sm:$0xff]
      %v496 = vld [vmem:[#allocation2 + $0x10] sm:$0xff]
      %v497 = vld [vmem:[#allocation2 + $0x18] sm:$0xff]
      %v498 = vld [vmem:[#allocation2 + $0x20] sm:$0xff]
      %v499 = vld [vmem:[#allocation2 + $0x28] sm:$0xff]
      %v500 = vld [vmem:[#allocation2 + $0x30] sm:$0xff]
      %v501 = vld [vmem:[#allocation2 + $0x38] sm:$0xff]
      %v502 = vld [vmem:[#allocation2 + $0x40] sm:$0xff]
      %v503 = vld [vmem:[#allocation2 + $0x48] sm:$0xff]
      %v504 = vld [vmem:[#allocation2 + $0x50] sm:$0xff]
      %v505 = vld [vmem:[#allocation2 + $0x58] sm:$0xff]
      %v506 = vld [vmem:[#allocation2 + $0x60] sm:$0xff]
      %v507 = vld [vmem:[#allocation2 + $0x68] sm:$0xff]
      %v508 = vld [vmem:[#allocation2 + $0x70] sm:$0xff]
      %v509 = vld [vmem:[#allocation2 + $0x78] sm:$0xff]
      %v510 = vld [vmem:[#allocation2 + $0x80] sm:$0xff]
      %v511 = vld [vmem:[#allocation2 + $0x88] sm:$0xff]
      %v512 = vld [vmem:[%s3] sm:$0xff]
      %514 = vset.pattern.permute.xlu0 0
      %515 = vperm.xlu0 %514, %v512
      %v516 = vpop.permute.xlu0 %515
      %vm518 = vcmask 588800
      %v520 = vsel %vm518, %v493, 0
      %522 = vmatpush.msra.mxu0 0.0
      %523 = vmatpush.msra.mxu0 0.0
      %524 = vmatpush.msra.mxu0 0.0
      %525 = vmatpush.msra.mxu0 0.0
      %526 = vmatpush.msra.mxu0 0.0
      %527 = vmatpush.msra.mxu0 0.0
      %528 = vmatpush.msra.mxu0 0.0
      %529 = vmatpush.msra.mxu0 %v510
      %530 = vmatpush.msra.mxu0 %v508
      %531 = vmatpush.msra.mxu0 %v506
      %532 = vmatpush.msra.mxu0 %v504
      %533 = vmatpush.msra.mxu0 %v502
      %534 = vmatpush.msra.mxu0 %v500
      %535 = vmatpush.msra.mxu0 %v498
      %536 = vmatpush.msra.mxu0 %v496
      %537 = vmatpush.msra.mxu0 %v494
      %538 = vmatmul.f32.gmra.mxu0 %v520
      %v539 = vpop.f32.mrf.mxu0
      %v540 = vadd.f32 %v516, %v539
      %541 = vdwg.mxu0
      %542 = vmatpush.msra.mxu0 0.0
      %543 = vmatpush.msra.mxu0 0.0
      %544 = vmatpush.msra.mxu0 0.0
      %545 = vmatpush.msra.mxu0 0.0
      %546 = vmatpush.msra.mxu0 0.0
      %547 = vmatpush.msra.mxu0 0.0
      %548 = vmatpush.msra.mxu0 0.0
      %549 = vmatpush.msra.mxu0 %v511
      %550 = vmatpush.msra.mxu0 %v509
      %551 = vmatpush.msra.mxu0 %v507
      %552 = vmatpush.msra.mxu0 %v505
      %553 = vmatpush.msra.mxu0 %v503
      %554 = vmatpush.msra.mxu0 %v501
      %555 = vmatpush.msra.mxu0 %v499
      %556 = vmatpush.msra.mxu0 %v497
      %557 = vmatpush.msra.mxu0 %v495
      %558 = vmatmul.f32.gmra.mxu0 %v520
      %v559 = vpop.f32.mrf.mxu0
      %v560 = vadd.f32 %v516, %v559
      %561 = vdwg.mxu0
      %v562 = vmax.f32 %v540, 0.0
      %v563 = vmax.f32 %v560, 0.0
      %v564 = vld [vmem:[%s4] sm:$0xff]
      %v565 = vld [vmem:[%s5] sm:$0xff]
      %567 = vset.pattern.permute.xlu0 0
      %568 = vperm.xlu0 %567, %v565
      %v569 = vpop.permute.xlu0 %568
      %vm571 = vcmask 64512
      %v573 = vsel %vm571, %v564, 0
      %575 = vmatpush.msra.mxu0 0.0
      %576 = vmatpush.msra.mxu0 0.0
      %577 = vmatpush.msra.mxu0 0.0
      %578 = vmatpush.msra.mxu0 0.0
      %579 = vmatpush.msra.mxu0 0.0
      %580 = vmatpush.msra.mxu0 0.0
      %581 = vmatpush.msra.mxu0 0.0
      %582 = vmatpush.msra.mxu0 0.0
      %583 = vmatpush.msra.mxu0 0.0
      %584 = vmatpush.msra.mxu0 0.0
      %585 = vmatpush.msra.mxu0 0.0
      %586 = vmatpush.msra.mxu0 0.0
      %587 = vmatpush.msra.mxu0 0.0
      %588 = vmatpush.msra.mxu0 0.0
      %589 = vmatpush.msra.mxu0 0.0
      %590 = vmatpush.msra.mxu0 %v562
      %591 = vmatmul.f32.gmra.mxu0 %v573
      %v592 = vpop.f32.mrf.mxu0
      %v593 = vadd.f32 %v569, %v592
      %594 = vdwg.mxu0
      %595 = vmatpush.msra.mxu0 0.0
      %596 = vmatpush.msra.mxu0 0.0
      %597 = vmatpush.msra.mxu0 0.0
      %598 = vmatpush.msra.mxu0 0.0
      %599 = vmatpush.msra.mxu0 0.0
      %600 = vmatpush.msra.mxu0 0.0
      %601 = vmatpush.msra.mxu0 0.0
      %602 = vmatpush.msra.mxu0 0.0
      %603 = vmatpush.msra.mxu0 0.0
      %604 = vmatpush.msra.mxu0 0.0
      %605 = vmatpush.msra.mxu0 0.0
      %606 = vmatpush.msra.mxu0 0.0
      %607 = vmatpush.msra.mxu0 0.0
      %608 = vmatpush.msra.mxu0 0.0
      %609 = vmatpush.msra.mxu0 0.0
      %610 = vmatpush.msra.mxu0 %v563
      %611 = vmatmul.f32.gmra.mxu0 %v573
      %v612 = vpop.f32.mrf.mxu0
      %v613 = vadd.f32 %v569, %v612
      %614 = vdwg.mxu0
      %v615 = vmax.f32 %v593, 0.0
      %v616 = vmax.f32 %v613, 0.0
      %v617 = vld [vmem:[%s6] sm:$0xff]
      %v618 = vld [vmem:[%s7] sm:$0xff]
      %620 = vset.pattern.permute.xlu0 0
      %621 = vperm.xlu0 %620, %v618
      %v622 = vpop.permute.xlu0 %621
      %v625 = vsel %vm571, %v617, 0
      %627 = vmatpush.msra.mxu0 0.0
      %628 = vmatpush.msra.mxu0 0.0
      %629 = vmatpush.msra.mxu0 0.0
      %630 = vmatpush.msra.mxu0 0.0
      %631 = vmatpush.msra.mxu0 0.0
      %632 = vmatpush.msra.mxu0 0.0
      %633 = vmatpush.msra.mxu0 0.0
      %634 = vmatpush.msra.mxu0 0.0
      %635 = vmatpush.msra.mxu0 0.0
      %636 = vmatpush.msra.mxu0 0.0
      %637 = vmatpush.msra.mxu0 0.0
      %638 = vmatpush.msra.mxu0 0.0
      %639 = vmatpush.msra.mxu0 0.0
      %640 = vmatpush.msra.mxu0 0.0
      %641 = vmatpush.msra.mxu0 0.0
      %642 = vmatpush.msra.mxu0 %v615
      %643 = vmatmul.f32.gmra.mxu0 %v625
      %v644 = vpop.f32.mrf.mxu0
      %v645 = vadd.f32 %v622, %v644
      %646 = vdwg.mxu0
      %647 = vmatpush.msra.mxu0 0.0
      %648 = vmatpush.msra.mxu0 0.0
      %649 = vmatpush.msra.mxu0 0.0
      %650 = vmatpush.msra.mxu0 0.0
      %651 = vmatpush.msra.mxu0 0.0
      %652 = vmatpush.msra.mxu0 0.0
      %653 = vmatpush.msra.mxu0 0.0
      %654 = vmatpush.msra.mxu0 0.0
      %655 = vmatpush.msra.mxu0 0.0
      %656 = vmatpush.msra.mxu0 0.0
      %657 = vmatpush.msra.mxu0 0.0
      %658 = vmatpush.msra.mxu0 0.0
      %659 = vmatpush.msra.mxu0 0.0
      %660 = vmatpush.msra.mxu0 0.0
      %661 = vmatpush.msra.mxu0 0.0
      %662 = vmatpush.msra.mxu0 %v616
      %663 = vmatmul.f32.gmra.mxu0 %v625
      %v664 = vpop.f32.mrf.mxu0
      %v665 = vadd.f32 %v622, %v664
      %666 = vdwg.mxu0
      %v667 = vmax.f32 %v645, 0.0
      %v668 = vmax.f32 %v665, 0.0
      %669 = vst [vmem:[%s305] sm:$0xff] %v667
      %670 = vst [vmem:[%s305 + $0x8] sm:$0xff] %v668
      %p671 = scmp.lt.s32.totalorder %s19, 1
      %s672 = scalar_select %p671, %s19, 1
      %s673 = smul.addr %s672, 2
      %s674 = smul.addr %s673, 8
      %s675 = scalar_lea.vmem %s8, %s674
      // Predicated region
      $region53: #{decode_pallas.1} parent=51 // pred_check
        %p676 = pneg %p210
      $region54: #{decode_pallas.1} parent=51 // pred_check_branch
        %678 = sbr.rel (%p676) target = $region56
      $region55: #{decode_pallas.1} parent=51 // pred_region
        _
      $region56: #{decode_pallas.1} parent=51 // pred_fallthru
        _
    $region52: #{decode_pallas.1} parent=5 // pred_fallthru
      _
    %p679 = scmp.le.s32.totalorder 2, %s14
    // Predicated region
    $region57: #{decode_pallas.1} parent=5 // pred_check
      %p680 = pneg %p679
    $region58: #{decode_pallas.1} parent=5 // pred_check_branch
      %682 = sbr.rel (%p680) target = $region60
    $region59: #{decode_pallas.1} parent=5 // pred_region
      %s683 = ssub.s32 %s14, 2
      // Predicated region
      $region61: #{decode_pallas.1} parent=59 // pred_check
        %p684 = pneg %p216
      $region62: #{decode_pallas.1} parent=59 // pred_check_branch
        %686 = sbr.rel (%p684) target = $region64
      $region63: #{decode_pallas.1} parent=59 // pred_region
        %p687 = scmp.lt.s32.totalorder %s20, 1
        %s688 = scalar_select %p687, %s20, 1
        %s689 = smul.addr %s688, 2
        %s690 = smul.addr %s689, 8
        %s691 = scalar_lea.vmem %s8, %s690
      $region64: #{decode_pallas.1} parent=59 // pred_fallthru
        _
    $region60: #{decode_pallas.1} parent=5 // pred_fallthru
      _
  $region6: #{decode_pallas.1} parent=0 // loop_footer
    %s18 = sadd.s32 1, %s14
  $region7: #{decode_pallas.1} parent=0 // loop_footer_branch
    %13 = sbr.rel target = $region3
  $region8: #{decode_pallas.1} parent=0 // loop_exit
    _

</llo_original>
